<compile_context>
chip_gen: v7x
topology: tpu7x:2x2x1
jax: 0.10.0
libtpu: 0.0.40
codegen_flags: <defaults>
</compile_context>

<pallas_src>
import functools

import jax
import jax.numpy as jnp
from jax.experimental import pallas as pl
from jax.experimental.pallas import tpu as pltpu


def _round_up(v: int, m: int) -> int:
    return ((v + m - 1) // m) * m


def _transform_kernel(x_ref, w_ref, a_ref, h_ref, sd_ref):
    # x_ref: [TM, F_in_p] bf16,  w_ref: [F_in_p, F_out_p] bf16
    # a_ref: [F_out_p, 128] bf16 (lane 0 = a_src, lane 1 = a_dst, rest 0)
    # h_ref: [TM, F_out_p] bf16,  sd_ref: [TM, 128] f32
    h = jnp.dot(x_ref[...], w_ref[...], preferred_element_type=jnp.float32)
    h_bf16 = h.astype(jnp.bfloat16)
    h_ref[...] = h_bf16
    sd_ref[...] = jnp.dot(h_bf16, a_ref[...], preferred_element_type=jnp.float32)


def _gat_attend_kernel(adj_ref, sd_ref, src_row_ref, h_ref, b_ref, out_ref,
                       *, gat_slope: float, layer_slope: float):
    # adj_ref:     [TM, N_p] int8   adj[i, j] != 0 iff edge j -> i (incl self)
    # sd_ref:      [TM, 128] f32    lane 1 = dst score of this target-row tile
    # src_row_ref: [1, N_p]  f32    src score of every source node
    # h_ref:       [N_p, F_out_p] bf16 (all source features)
    # b_ref:       [1, F_out_p] f32
    # out_ref:     [TM, F_out_p] f32
    dst = sd_ref[...][:, 1:2]                              # [TM, 1]
    e = dst + src_row_ref[...]                             # [TM, N_p] broadcast
    e = jnp.where(e > 0, e, gat_slope * e)                 # GAT LeakyReLU(0.2)

    mask = adj_ref[...] != 0
    e = jnp.where(mask, e, jnp.float32(-1e30))
    e_max = jnp.max(e, axis=-1, keepdims=True)             # [TM, 1]  (XLU)
    p = jnp.exp(e - e_max)                                 # EUP
    p = jnp.where(mask, p, 0.0)
    denom = jnp.sum(p, axis=-1, keepdims=True)             # [TM, 1]  (XLU)
    attn = (p * pl.reciprocal(denom, approx=True)).astype(jnp.bfloat16)

    out = jnp.dot(attn, h_ref[...], preferred_element_type=jnp.float32)
    out = out + b_ref[...]
    # Layer-level LeakyReLU(alpha); dropout is identity in eval mode.
    out_ref[...] = jnp.where(out > 0, out, layer_slope * out).astype(out_ref.dtype)


def graph_attention_layer(x, edge_index, params, *, alpha=0.2,
                          gat_negative_slope=0.2, dropout=0.5, tile_m=128):
    """Forward pass of GraphAttentionLayer (eval mode).

    x:          [N, F_in] float32 node features
    edge_index: [2, E] int32, row 0 = source node, row 1 = target node
    params:     dict with 'W' [F_in, F_out], 'a_src' [F_out], 'a_dst' [F_out],
                'bias' [F_out]
    """
    del dropout  # identity in eval mode
    n, f_in = x.shape
    f_out = params["W"].shape[1]

    # Padded sizes: features to 128 lanes, nodes to a multiple of the row tile.
    f_in_p = _round_up(f_in, 128)
    f_out_p = _round_up(f_out, 128)
    tm = tile_m
    n_p = _round_up(max(n, tm), tm)

    # --- plain-JAX glue: pad operands, densify edge_index into int8 adj ---
    x_p = jnp.zeros((n_p, f_in_p), jnp.bfloat16).at[:n, :f_in].set(
        x.astype(jnp.bfloat16))
    w_p = jnp.zeros((f_in_p, f_out_p), jnp.bfloat16).at[:f_in, :f_out].set(
        params["W"].astype(jnp.bfloat16))
    a_p = jnp.zeros((f_out_p, 128), jnp.bfloat16)
    a_p = a_p.at[:f_out, 0].set(params["a_src"].astype(jnp.bfloat16))
    a_p = a_p.at[:f_out, 1].set(params["a_dst"].astype(jnp.bfloat16))
    b_p = jnp.zeros((1, f_out_p), jnp.float32).at[0, :f_out].set(
        params["bias"].astype(jnp.float32))

    adj = jnp.zeros((n_p, n_p), jnp.int8)
    adj = adj.at[edge_index[1], edge_index[0]].set(1)       # edge j -> i
    diag = jnp.arange(n_p)
    adj = adj.at[diag, diag].set(1)                         # self loops

    grid = (n_p // tm,)
    cparams = pltpu.CompilerParams(
        dimension_semantics=("parallel",),
        vmem_limit_bytes=32 * 1024 * 1024,
    )

    # --- kernel 1: h = x @ W and fused scores sd = h @ [a_src | a_dst] ---
    h_bf16, sd = pl.pallas_call(
        _transform_kernel,
        out_shape=(jax.ShapeDtypeStruct((n_p, f_out_p), jnp.bfloat16),
                   jax.ShapeDtypeStruct((n_p, 128), jnp.float32)),
        grid_spec=pltpu.PrefetchScalarGridSpec(
            num_scalar_prefetch=0,
            grid=grid,
            in_specs=[
                pl.BlockSpec((tm, f_in_p), lambda i: (i, 0)),
                pl.BlockSpec((f_in_p, f_out_p), lambda i: (0, 0)),
                pl.BlockSpec((f_out_p, 128), lambda i: (0, 0)),
            ],
            out_specs=[
                pl.BlockSpec((tm, f_out_p), lambda i: (i, 0)),
                pl.BlockSpec((tm, 128), lambda i: (i, 0)),
            ],
        ),
        compiler_params=cparams,
    )(x_p, w_p, a_p)

    # src score of every source node as a lane-major row (tiny O(N) glue
    # transpose outside the kernel; keeps kernel stores lane-dense).
    src_row = sd[:, 0].reshape(1, n_p)

    # --- kernel 2: row-tiled masked softmax + message aggregation ---
    kernel = functools.partial(
        _gat_attend_kernel,
        gat_slope=float(gat_negative_slope),
        layer_slope=float(alpha),
    )
    out_p = pl.pallas_call(
        kernel,
        out_shape=jax.ShapeDtypeStruct((n_p, f_out_p), jnp.float32),
        grid_spec=pltpu.PrefetchScalarGridSpec(
            num_scalar_prefetch=0,
            grid=grid,
            in_specs=[
                pl.BlockSpec((tm, n_p), lambda i: (i, 0)),       # adj row slab
                pl.BlockSpec((tm, 128), lambda i: (i, 0)),       # sd tile
                pl.BlockSpec((1, n_p), lambda i: (0, 0)),        # src row
                pl.BlockSpec((n_p, f_out_p), lambda i: (0, 0)),  # h (all srcs)
                pl.BlockSpec((1, f_out_p), lambda i: (0, 0)),    # bias
            ],
            out_specs=pl.BlockSpec((tm, f_out_p), lambda i: (i, 0)),
        ),
        compiler_params=cparams,
    )(adj, sd, src_row, h_bf16, b_p)

    return out_p[:n, :f_out]


def _reference(x, edge_index, params, *, alpha=0.2, gat_negative_slope=0.2):
    """Pure-JAX reference mirroring the kernel's bf16-at-dot-boundary math."""
    n = x.shape[0]
    adj = jnp.zeros((n, n), jnp.float32)
    adj = adj.at[edge_index[1], edge_index[0]].set(1.0)
    adj = adj.at[jnp.arange(n), jnp.arange(n)].set(1.0)

    h = jnp.dot(x.astype(jnp.bfloat16), params["W"].astype(jnp.bfloat16),
                preferred_element_type=jnp.float32)
    h_bf16 = h.astype(jnp.bfloat16)
    src = jnp.dot(h_bf16, params["a_src"].astype(jnp.bfloat16),
                  preferred_element_type=jnp.float32)
    dst = jnp.dot(h_bf16, params["a_dst"].astype(jnp.bfloat16),
                  preferred_element_type=jnp.float32)
    e = dst[:, None] + src[None, :]
    e = jnp.where(e > 0, e, gat_negative_slope * e)
    e = jnp.where(adj > 0, e, -1e30)
    p = jnp.exp(e - jnp.max(e, axis=-1, keepdims=True))
    p = jnp.where(adj > 0, p, 0.0)
    attn = (p / jnp.sum(p, axis=-1, keepdims=True)).astype(jnp.bfloat16)
    out = jnp.dot(attn, h_bf16, preferred_element_type=jnp.float32)
    out = out + params["bias"][None, :]
    return jnp.where(out > 0, out, alpha * out)


if __name__ == "__main__":
    key = jax.random.PRNGKey(0)
    k_x, k_e, k_w, k_as, k_ad = jax.random.split(key, 5)

    N = 200       # number of nodes (pads to 256 -> grid of 2 row tiles)
    F_IN = 8      # in_features
    F_OUT = 32    # out_features
    E = 600       # number of directed edges

    x = jax.random.normal(k_x, (N, F_IN), dtype=jnp.float32)
    edge_index = jax.random.randint(k_e, (2, E), 0, N, dtype=jnp.int32)

    params = {
        "W": jax.random.normal(k_w, (F_IN, F_OUT), jnp.float32)
             * (1.0 / jnp.sqrt(F_IN)),
        "a_src": jax.random.normal(k_as, (F_OUT,), jnp.float32)
                 * (1.0 / jnp.sqrt(F_OUT)),
        "a_dst": jax.random.normal(k_ad, (F_OUT,), jnp.float32)
                 * (1.0 / jnp.sqrt(F_OUT)),
        "bias": jnp.zeros((F_OUT,), jnp.float32),
    }

    y = graph_attention_layer(x, edge_index, params, alpha=0.2)
    y = jax.block_until_ready(y)

    y_ref = _reference(x, edge_index, params, alpha=0.2)
    assert y.shape == (N, F_OUT)
    # bf16 matmuls + approx reciprocal -> looser tolerance than pure-f32.
    max_diff = float(jnp.max(jnp.abs(y - y_ref)))
    assert jnp.allclose(y, y_ref, atol=1e-2, rtol=1e-2), (
        "mismatch vs reference: max abs diff = %g" % max_diff)

    print("KERNEL_OK")
</pallas_src>

<mosaic_0001>
module attributes {stable_mosaic.version = 11 : i64} {
  func.func @_transform_kernel(%arg0: i32, %arg1: memref<128x128xbf16, #tpu.memory_space<vmem>>, %arg2: memref<128x128xbf16, #tpu.memory_space<vmem>>, %arg3: memref<128x128xbf16, #tpu.memory_space<vmem>>, %arg4: memref<128x128xbf16, #tpu.memory_space<vmem>>, %arg5: memref<128x128xf32, #tpu.memory_space<vmem>>) attributes {dimension_semantics = [#tpu.dimension_semantics<parallel>], iteration_bounds = array<i64: 2>, scalar_prefetch = 0 : i64, scratch_operands = 0 : i64, tpu.core_type = #tpu.core_type<tc>, window_params = [{transform_indices = @transform_0, window_bounds = array<i64: 128, 128>}, {pipeline_mode = #tpu.pipeline_mode<synchronous>, transform_indices = @transform_1, window_bounds = array<i64: 128, 128>}, {pipeline_mode = #tpu.pipeline_mode<synchronous>, transform_indices = @transform_2, window_bounds = array<i64: 128, 128>}, {transform_indices = @transform_3, window_bounds = array<i64: 128, 128>}, {transform_indices = @transform_4, window_bounds = array<i64: 128, 128>}]} {
    %c0 = arith.constant 0 : index
    %c0_0 = arith.constant 0 : index
    %0 = vector.load %arg1[%c0, %c0_0] : memref<128x128xbf16, #tpu.memory_space<vmem>>, vector<128x128xbf16>
    %c0_1 = arith.constant 0 : index
    %c0_2 = arith.constant 0 : index
    %1 = vector.load %arg2[%c0_1, %c0_2] : memref<128x128xbf16, #tpu.memory_space<vmem>>, vector<128x128xbf16>
    %cst = arith.constant dense<0.000000e+00> : vector<128x128xf32>
    %2 = tpu.matmul %0, %1, %cst {dimension_numbers = #tpu.dot_dimension_numbers<[1], [0], [0], [1], [0, 0, 1, 1], [], []>} : vector<128x128xbf16>, vector<128x128xbf16>, vector<128x128xf32> -> vector<128x128xf32>
    %3 = arith.truncf %2 : vector<128x128xf32> to vector<128x128xbf16>
    %c0_3 = arith.constant 0 : index
    %c0_4 = arith.constant 0 : index
    %4 = vector.load %arg4[%c0_3, %c0_4] : memref<128x128xbf16, #tpu.memory_space<vmem>>, vector<128x128xbf16>
    tpu.vector_store %arg4[%c0_3, %c0_4], %3 {strides = array<i32>} : memref<128x128xbf16, #tpu.memory_space<vmem>>, vector<128x128xbf16>,
    %c0_5 = arith.constant 0 : index
    %c0_6 = arith.constant 0 : index
    %5 = vector.load %arg3[%c0_5, %c0_6] : memref<128x128xbf16, #tpu.memory_space<vmem>>, vector<128x128xbf16>
    %cst_7 = arith.constant dense<0.000000e+00> : vector<128x128xf32>
    %6 = tpu.matmul %3, %5, %cst_7 {dimension_numbers = #tpu.dot_dimension_numbers<[1], [0], [0], [1], [0, 0, 1, 1], [], []>} : vector<128x128xbf16>, vector<128x128xbf16>, vector<128x128xf32> -> vector<128x128xf32>
    %c0_8 = arith.constant 0 : index
    %c0_9 = arith.constant 0 : index
    %7 = vector.load %arg5[%c0_8, %c0_9] : memref<128x128xf32, #tpu.memory_space<vmem>>, vector<128x128xf32>
    tpu.vector_store %arg5[%c0_8, %c0_9], %6 {strides = array<i32>} : memref<128x128xf32, #tpu.memory_space<vmem>>, vector<128x128xf32>,
    return
  }
  func.func @transform_0(%arg0: i32) -> (i32, i32) {
    %c0_i32 = arith.constant 0 : i32
    %c0_i32_0 = arith.constant 0 : i32
    return %arg0, %c0_i32 : i32, i32
  }
  func.func @transform_1(%arg0: i32) -> (i32, i32) {
    %c0_i32 = arith.constant 0 : i32
    %c0_i32_0 = arith.constant 0 : i32
    %c0_i32_1 = arith.constant 0 : i32
    return %c0_i32, %c0_i32_0 : i32, i32
  }
  func.func @transform_2(%arg0: i32) -> (i32, i32) {
    %c0_i32 = arith.constant 0 : i32
    %c0_i32_0 = arith.constant 0 : i32
    %c0_i32_1 = arith.constant 0 : i32
    return %c0_i32, %c0_i32_0 : i32, i32
  }
  func.func @transform_3(%arg0: i32) -> (i32, i32) {
    %c0_i32 = arith.constant 0 : i32
    %c0_i32_0 = arith.constant 0 : i32
    return %arg0, %c0_i32 : i32, i32
  }
  func.func @transform_4(%arg0: i32) -> (i32, i32) {
    %c0_i32 = arith.constant 0 : i32
    %c0_i32_0 = arith.constant 0 : i32
    return %arg0, %c0_i32 : i32, i32
  }
}

</mosaic_0001>

<llo_original>
// kernel: tpu_custom_call.1
$region0: #{tpu_custom_call.1}
  #allocation0 [shape = 'u32[]', space=smem, size = 0x4, offset = 0x4, fixed_abs, tag = 'smem constant byte address 0x4 - core index']
  #allocation1 [shape = 'u32[144,128]{1,0:T(1,128)}', space=vmem, size = 0x12000, scoped, tag = 'internal scratch']
  %s0 = inlined_call_operand.hbm [shape: bf16[256,128], index: 0, kind: input, shape index: {}]
  %s1 = inlined_call_operand.hbm [shape: bf16[128,128], index: 1, kind: input, shape index: {}]
  %s2 = inlined_call_operand.hbm [shape: bf16[128,128], index: 2, kind: input, shape index: {}]
  %s3 = inlined_call_operand.hbm [shape: bf16[256,128], index: 3, kind: output, shape index: {0}]
  %s4 = inlined_call_operand.hbm [shape: f32[256,128], index: 4, kind: output, shape index: {1}]
  %5 = xla_tuple %s3, %s4
  %s6 = sld [smem:[#allocation0]]
  $region65: #{tpu_custom_call.1} parent=0
    _
  %s8 = ssub.s32 1, %s6
  %s9 = scalar_select 0, %s8, %s6
  $region1: #{tpu_custom_call.1} parent=0
    #allocation2 [shape = 'u8[65536]{0}', space=vmem, size = 0x10000, scoped, tag = 'input window, operand 0']
    #allocation3 [shape = 's32[2]{0}', space=sflag, size = 0x8, scoped, tag = 'scoped memory for tpu_custom_call.1']
    #allocation4 [shape = 's32[2]{0}', space=sflag, size = 0x8, scoped, tag = 'scoped memory for tpu_custom_call.1']
    #allocation5 [shape = 'u8[32768]{0}', space=vmem, size = 0x8000, scoped, tag = 'input window, operand 1, single buffered']
    #allocation6 [shape = 's32[1]{0}', space=sflag, size = 0x4, scoped, tag = 'scoped memory for tpu_custom_call.1']
    #allocation7 [shape = 'u8[32768]{0}', space=vmem, size = 0x8000, scoped, tag = 'input window, operand 2, single buffered']
    #allocation8 [shape = 'u8[65536]{0}', space=vmem, size = 0x10000, scoped, tag = 'output window, operand 0']
    #allocation9 [shape = 'u8[131072]{0}', space=vmem, size = 0x20000, scoped, tag = 'output window, operand 1']
    #allocation10 [shape = 's32[2]{0}', space=sflag, size = 0x8, scoped, tag = 'scoped memory for tpu_custom_call.1']
    %10 = vsyncpa [#allocation3], 0
    %s11 = scalar_lea.sflag [#allocation3], 1
    %12 = vsyncpa %s11, 0
    %13 = vsyncpa [#allocation6], 0
    %14 = vsyncpa [#allocation4], 0
    %s15 = scalar_lea.sflag [#allocation4], 1
    %16 = vsyncpa %s15, 0
    %17 = vsyncpa [#allocation10], 0
    %s18 = scalar_lea.sflag [#allocation10], 1
    %19 = vsyncpa %s18, 0
    loop: start=0, step=1, limit=4
    $region2: #{tpu_custom_call.1} parent=1 // loop_pre_header
      _
    $region3: #{tpu_custom_call.1} parent=1 // loop_header
      %s21 = sphi 0, %s25
      %p22 = scmp.ge.s32.totalorder %s21, 4
      %s31 = sphi 0, %s33
      %s34 = sphi 0, %s31
      %s35 = sphi 0, %s34
      %s51 = sphi 0, %s35
      %s55 = sphi 0, %s55
      %s57 = sphi 0, %s55
      %s58 = sphi 0, %s57
      %s72 = sphi 0, %s58
      %s76 = sphi 0, %s76
      %s78 = sphi 0, %s76
      %s79 = sphi 0, %s78
      %s93 = sphi 0, %s79
      %s99 = sphi 0, %s101
      %s102 = sphi 0, %s99
      %s103 = sphi 0, %s102
      %s119 = sphi 0, %s103
      %s125 = sphi 0, %s127
      %s128 = sphi 0, %s125
      %s129 = sphi 0, %s128
      %s145 = sphi 0, %s129
    $region4: #{tpu_custom_call.1} parent=1 // loop_header_branch
      %24 = sbr.rel (%p22) target = $region8
    $region5: #{tpu_custom_call.1} parent=1 // loop_body
      %s26 = ssub.s32 %s21, 1
      %s27 = ssub.s32 %s21, 2
      %s28 = sadd.s32 %s21, 1
      %s29 = ssub.s32 %s21, %s28
      %p30 = scmp.eq.s32.totalorder %s29, 0
      %s32 = sadd.s32 %s31, 1
      %s33 = scalar_select %p30, %s31, %s32
      %p36 = pneg %p30
      %p37 = scmp.eq.s32.totalorder %s21, 1
      %p38 = por %p36, %p37
      %p39 = scmp.ne.s32.totalorder %s31, %s34
      %p40 = scmp.eq.s32.totalorder %s21, 0
      %p41 = por %p39, %p40
      %p42 = scmp.ne.s32.totalorder %s31, %s34
      %p43 = scmp.eq.s32.totalorder %s26, 1
      %p44 = por %p42, %p43
      %p45 = scmp.ne.s32.totalorder %s34, %s35
      %p46 = scmp.eq.s32.totalorder %s26, 0
      %p47 = por %p45, %p46
      %p48 = scmp.ne.s32.totalorder %s34, %s35
      %p49 = scmp.eq.s32.totalorder %s27, 1
      %p50 = por %p48, %p49
      %p52 = scmp.ne.s32.totalorder %s35, %s51
      %p53 = scmp.eq.s32.totalorder %s27, 0
      %p54 = por %p52, %p53
      %s56 = sadd.s32 %s55, 1
      %p59 = scmp.eq.s32.totalorder %s21, 1
      %p60 = scmp.ne.s32.totalorder %s55, %s57
      %p61 = scmp.eq.s32.totalorder %s21, 0
      %p62 = por %p60, %p61
      %p63 = scmp.ne.s32.totalorder %s55, %s57
      %p64 = scmp.eq.s32.totalorder %s26, 1
      %p65 = por %p63, %p64
      %p66 = scmp.ne.s32.totalorder %s57, %s58
      %p67 = scmp.eq.s32.totalorder %s26, 0
      %p68 = por %p66, %p67
      %p69 = scmp.ne.s32.totalorder %s57, %s58
      %p70 = scmp.eq.s32.totalorder %s27, 1
      %p71 = por %p69, %p70
      %p73 = scmp.ne.s32.totalorder %s58, %s72
      %p74 = scmp.eq.s32.totalorder %s27, 0
      %p75 = por %p73, %p74
      %s77 = sadd.s32 %s76, 1
      %p80 = scmp.eq.s32.totalorder %s21, 1
      %p81 = scmp.ne.s32.totalorder %s76, %s78
      %p82 = scmp.eq.s32.totalorder %s21, 0
      %p83 = por %p81, %p82
      %p84 = scmp.ne.s32.totalorder %s76, %s78
      %p85 = scmp.eq.s32.totalorder %s26, 1
      %p86 = por %p84, %p85
      %p87 = scmp.ne.s32.totalorder %s78, %s79
      %p88 = scmp.eq.s32.totalorder %s26, 0
      %p89 = por %p87, %p88
      %p90 = scmp.ne.s32.totalorder %s78, %s79
      %p91 = scmp.eq.s32.totalorder %s27, 1
      %p92 = por %p90, %p91
      %p94 = scmp.ne.s32.totalorder %s79, %s93
      %p95 = scmp.eq.s32.totalorder %s27, 0
      %p96 = por %p94, %p95
      %s97 = ssub.s32 %s21, %s28
      %p98 = scmp.eq.s32.totalorder %s97, 0
      %s100 = sadd.s32 %s99, 1
      %s101 = scalar_select %p98, %s99, %s100
      %p104 = pneg %p98
      %p105 = scmp.eq.s32.totalorder %s21, 1
      %p106 = por %p104, %p105
      %p107 = scmp.ne.s32.totalorder %s99, %s102
      %p108 = scmp.eq.s32.totalorder %s21, 0
      %p109 = por %p107, %p108
      %p110 = scmp.ne.s32.totalorder %s99, %s102
      %p111 = scmp.eq.s32.totalorder %s26, 1
      %p112 = por %p110, %p111
      %p113 = scmp.ne.s32.totalorder %s102, %s103
      %p114 = scmp.eq.s32.totalorder %s26, 0
      %p115 = por %p113, %p114
      %p116 = scmp.ne.s32.totalorder %s102, %s103
      %p117 = scmp.eq.s32.totalorder %s27, 1
      %p118 = por %p116, %p117
      %p120 = scmp.ne.s32.totalorder %s103, %s119
      %p121 = scmp.eq.s32.totalorder %s27, 0
      %p122 = por %p120, %p121
      %s123 = ssub.s32 %s21, %s28
      %p124 = scmp.eq.s32.totalorder %s123, 0
      %s126 = sadd.s32 %s125, 1
      %s127 = scalar_select %p124, %s125, %s126
      %p130 = pneg %p124
      %p131 = scmp.eq.s32.totalorder %s21, 1
      %p132 = por %p130, %p131
      %p133 = scmp.ne.s32.totalorder %s125, %s128
      %p134 = scmp.eq.s32.totalorder %s21, 0
      %p135 = por %p133, %p134
      %p136 = scmp.ne.s32.totalorder %s125, %s128
      %p137 = scmp.eq.s32.totalorder %s26, 1
      %p138 = por %p136, %p137
      %p139 = scmp.ne.s32.totalorder %s128, %s129
      %p140 = scmp.eq.s32.totalorder %s26, 0
      %p141 = por %p139, %p140
      %p142 = scmp.ne.s32.totalorder %s128, %s129
      %p143 = scmp.eq.s32.totalorder %s27, 1
      %p144 = por %p142, %p143
      %p146 = scmp.ne.s32.totalorder %s129, %s145
      %p147 = scmp.eq.s32.totalorder %s27, 0
      %p148 = por %p146, %p147
      %p149 = scmp.le.s32.totalorder 1, %s21
      %p150 = scmp.lt.s32.totalorder %s21, 3
      %p151 = pnand %p149, %p150
      %p152 = pneg %p151
      // Predicated region
      $region9: #{tpu_custom_call.1} parent=5 // pred_check
        _
      $region10: #{tpu_custom_call.1} parent=5 // pred_check_branch
        %154 = sbr.rel (%p151) target = $region12
      $region11: #{tpu_custom_call.1} parent=5 // pred_region
        %s155 = ssub.s32 %s21, 1
        // Predicated region
        $region13: #{tpu_custom_call.1} parent=11 // pred_check
          %p156 = pneg %p68
        $region14: #{tpu_custom_call.1} parent=11 // pred_check_branch
          %158 = sbr.rel (%p156) target = $region16
        $region15: #{tpu_custom_call.1} parent=11 // pred_region
          %s160 = ssub.s32 1024, 1024
          %161 = vsyncadd [#allocation6], %s160
          %s162 = sshll.u32 [#allocation5], 4
          %s163 = int_to_ptr.vmem [resolvable:$true] %s162
          %168 = dma.hbm_to_vmem [thread:$0]  %s1, 1024, %s163, [#allocation6], 64, 64, 4
        $region16: #{tpu_custom_call.1} parent=11 // pred_fallthru
          _
        // Predicated region
        $region17: #{tpu_custom_call.1} parent=11 // pred_check
          %p169 = pneg %p89
        $region18: #{tpu_custom_call.1} parent=11 // pred_check_branch
          %171 = sbr.rel (%p169) target = $region20
        $region19: #{tpu_custom_call.1} parent=11 // pred_region
          %s173 = ssub.s32 1024, 1024
          %174 = vsyncadd [#allocation6], %s173
          %s175 = sshll.u32 [#allocation7], 4
          %s176 = int_to_ptr.vmem [resolvable:$true] %s175
          %181 = dma.hbm_to_vmem [thread:$0]  %s2, 1024, %s176, [#allocation6], 64, 64, 4
        $region20: #{tpu_custom_call.1} parent=11 // pred_fallthru
          _
      $region12: #{tpu_custom_call.1} parent=5 // pred_fallthru
        _
      %p182 = scmp.lt.s32.totalorder %s21, 2
      // Predicated region
      $region21: #{tpu_custom_call.1} parent=5 // pred_check
        %p183 = pneg %p182
      $region22: #{tpu_custom_call.1} parent=5 // pred_check_branch
        %185 = sbr.rel (%p183) target = $region24
      $region23: #{tpu_custom_call.1} parent=5 // pred_region
        // Predicated region
        $region25: #{tpu_custom_call.1} parent=23 // pred_check
          %p186 = pneg %p41
        $region26: #{tpu_custom_call.1} parent=23 // pred_check_branch
          %188 = sbr.rel (%p186) target = $region28
        $region27: #{tpu_custom_call.1} parent=23 // pred_region
          %s189 = sand.u32 %s31, 1
          %s190 = scalar_lea.sflag [#allocation3], %s189
          %s191 = sand.u32 %s31, 1
          %s192 = smul.addr %s191, 64
          %s193 = scalar_lea.vmem [#allocation2], %s192
          %s194 = smul.u32 16, %s21
          %s196 = ssub.s32 1024, 1024
          %197 = vsyncadd %s190, %s196
          %s198 = smul.addr %s194, 64
          %s199 = scalar_lea.hbm %s0, %s198
          %s200 = sshll.u32 %s193, 4
          %s201 = int_to_ptr.vmem [resolvable:$true] %s200
          %206 = dma.hbm_to_vmem [thread:$0]  %s199, 1024, %s201, %s190, 64, 64, 4
        $region28: #{tpu_custom_call.1} parent=23 // pred_fallthru
          _
      $region24: #{tpu_custom_call.1} parent=5 // pred_fallthru
        _
      %p207 = scmp.le.s32.totalorder 1, %s21
      %p208 = scmp.lt.s32.totalorder %s21, 3
      %p209 = pnand %p207, %p208
      %p210 = pneg %p209
      // Predicated region
      $region29: #{tpu_custom_call.1} parent=5 // pred_check
        _
      $region30: #{tpu_custom_call.1} parent=5 // pred_check_branch
        %212 = sbr.rel (%p209) target = $region32
      $region31: #{tpu_custom_call.1} parent=5 // pred_region
        %s213 = ssub.s32 %s21, 1
        %s214 = sand.u32 %s34, 1
        %s215 = scalar_lea.sflag [#allocation3], %s214
        %s216 = sand.u32 %s34, 1
        %s217 = smul.addr %s216, 64
        %s218 = scalar_lea.vmem [#allocation2], %s217
        // Predicated region
        $region33: #{tpu_custom_call.1} parent=31 // pred_check
          %p219 = pneg %p47
        $region34: #{tpu_custom_call.1} parent=31 // pred_check_branch
          %221 = sbr.rel (%p219) target = $region36
        $region35: #{tpu_custom_call.1} parent=31 // pred_region
          %222 = dma.done %s215, 1024
        $region36: #{tpu_custom_call.1} parent=31 // pred_fallthru
          _
        // Predicated region
        $region37: #{tpu_custom_call.1} parent=31 // pred_check
          %p223 = pneg %p68
        $region38: #{tpu_custom_call.1} parent=31 // pred_check_branch
          %225 = sbr.rel (%p223) target = $region40
        $region39: #{tpu_custom_call.1} parent=31 // pred_region
          %226 = dma.done [#allocation6], 1024
        $region40: #{tpu_custom_call.1} parent=31 // pred_fallthru
          _
        // Predicated region
        $region41: #{tpu_custom_call.1} parent=31 // pred_check
          %p227 = pneg %p89
        $region42: #{tpu_custom_call.1} parent=31 // pred_check_branch
          %229 = sbr.rel (%p227) target = $region44
        $region43: #{tpu_custom_call.1} parent=31 // pred_region
          %230 = dma.done [#allocation6], 1024
        $region44: #{tpu_custom_call.1} parent=31 // pred_fallthru
          _
        %s231 = sand.u32 %s34, 1
        %s232 = scalar_lea.sflag [#allocation3], %s231
        %s233 = sand.u32 %s34, 1
        %s234 = smul.addr %s233, 64
        %s235 = scalar_lea.vmem [#allocation2], %s234
        %p236 = pneg %p47
        %p237 = pneg %p44
        %p238 = pneg %p68
        %p239 = pneg %p65
        %p240 = pneg %p89
        %p241 = pneg %p86
        %p242 = pneg %p115
        %p243 = pneg %p112
        %s244 = sand.u32 %s102, 1
        %s245 = scalar_lea.sflag [#allocation4], %s244
        %s246 = sand.u32 %s102, 1
        %s247 = smul.addr %s246, 64
        %s248 = scalar_lea.vmem [#allocation8], %s247
        %p249 = pneg %p141
        %p250 = pneg %p138
        %s251 = sand.u32 %s128, 1
        %s252 = scalar_lea.sflag [#allocation10], %s251
        %s253 = sand.u32 %s128, 1
        %s254 = smul.addr %s253, 128
        %s255 = scalar_lea.vmem [#allocation9], %s254
        %s256 = smul.u32 16, %s26
        %s257 = smul.u32 16, %s26
        %s258 = smul.u32 16, %s26
        %v260 = vld [vmem:[%s218] sm:$0xf]
        %v261 = vld [vmem:[%s218 + $0x4] sm:$0xf]
        %v262 = vld [vmem:[%s218 + $0x8] sm:$0xf]
        %v263 = vld [vmem:[%s218 + $0xc] sm:$0xf]
        %v264 = vld [vmem:[%s218 + $0x10] sm:$0xf]
        %v265 = vld [vmem:[%s218 + $0x14] sm:$0xf]
        %v266 = vld [vmem:[%s218 + $0x18] sm:$0xf]
        %v267 = vld [vmem:[%s218 + $0x1c] sm:$0xf]
        %v268 = vld [vmem:[%s218 + $0x20] sm:$0xf]
        %v269 = vld [vmem:[%s218 + $0x24] sm:$0xf]
        %v270 = vld [vmem:[%s218 + $0x28] sm:$0xf]
        %v271 = vld [vmem:[%s218 + $0x2c] sm:$0xf]
        %v272 = vld [vmem:[%s218 + $0x30] sm:$0xf]
        %v273 = vld [vmem:[%s218 + $0x34] sm:$0xf]
        %v274 = vld [vmem:[%s218 + $0x38] sm:$0xf]
        %v275 = vld [vmem:[%s218 + $0x3c] sm:$0xf]
        %v276 = vld [vmem:[#allocation5] sm:$0xf]
        %v277 = vld [vmem:[#allocation5 + $0x4] sm:$0xf]
        %v278 = vld [vmem:[#allocation5 + $0x8] sm:$0xf]
        %v279 = vld [vmem:[#allocation5 + $0xc] sm:$0xf]
        %v280 = vld [vmem:[#allocation5 + $0x10] sm:$0xf]
        %v281 = vld [vmem:[#allocation5 + $0x14] sm:$0xf]
        %v282 = vld [vmem:[#allocation5 + $0x18] sm:$0xf]
        %v283 = vld [vmem:[#allocation5 + $0x1c] sm:$0xf]
        %v284 = vld [vmem:[#allocation5 + $0x20] sm:$0xf]
        %v285 = vld [vmem:[#allocation5 + $0x24] sm:$0xf]
        %v286 = vld [vmem:[#allocation5 + $0x28] sm:$0xf]
        %v287 = vld [vmem:[#allocation5 + $0x2c] sm:$0xf]
        %v288 = vld [vmem:[#allocation5 + $0x30] sm:$0xf]
        %v289 = vld [vmem:[#allocation5 + $0x34] sm:$0xf]
        %v290 = vld [vmem:[#allocation5 + $0x38] sm:$0xf]
        %v291 = vld [vmem:[#allocation5 + $0x3c] sm:$0xf]
        %v308 = vunpack.c.l.b16 %v260
        %v309 = vunpack.c.l.b16 %v261
        %v310 = vunpack.c.l.b16 %v262
        %v311 = vunpack.c.l.b16 %v263
        %v312 = vunpack.c.l.b16 %v264
        %v313 = vunpack.c.l.b16 %v265
        %v314 = vunpack.c.l.b16 %v266
        %v315 = vunpack.c.l.b16 %v267
        %v316 = vunpack.c.l.b16 %v268
        %v317 = vunpack.c.l.b16 %v269
        %v318 = vunpack.c.l.b16 %v270
        %v319 = vunpack.c.l.b16 %v271
        %v320 = vunpack.c.l.b16 %v272
        %v321 = vunpack.c.l.b16 %v273
        %v322 = vunpack.c.l.b16 %v274
        %v323 = vunpack.c.l.b16 %v275
        %v324 = vpack.c.b16 %v309, %v308
        %v325 = vpack.c.b16 %v311, %v310
        %v326 = vpack.c.b16 %v313, %v312
        %v327 = vpack.c.b16 %v315, %v314
        %v328 = vpack.c.b16 %v317, %v316
        %v329 = vpack.c.b16 %v319, %v318
        %v330 = vpack.c.b16 %v321, %v320
        %v331 = vpack.c.b16 %v323, %v322
        %v356 = vunpack.c.l.b16 %v276
        %v357 = vunpack.c.l.b16 %v277
        %v358 = vunpack.c.l.b16 %v278
        %v359 = vunpack.c.l.b16 %v279
        %v360 = vunpack.c.l.b16 %v280
        %v361 = vunpack.c.l.b16 %v281
        %v362 = vunpack.c.l.b16 %v282
        %v363 = vunpack.c.l.b16 %v283
        %v364 = vunpack.c.l.b16 %v284
        %v365 = vunpack.c.l.b16 %v285
        %v366 = vunpack.c.l.b16 %v286
        %v367 = vunpack.c.l.b16 %v287
        %v368 = vunpack.c.l.b16 %v288
        %v369 = vunpack.c.l.b16 %v289
        %v370 = vunpack.c.l.b16 %v290
        %v371 = vunpack.c.l.b16 %v291
        %v372 = vpack.c.b16 %v357, %v356
        %v373 = vpack.c.b16 %v359, %v358
        %v374 = vpack.c.b16 %v361, %v360
        %v375 = vpack.c.b16 %v363, %v362
        %v376 = vpack.c.b16 %v365, %v364
        %v377 = vpack.c.b16 %v367, %v366
        %v378 = vpack.c.b16 %v369, %v368
        %v379 = vpack.c.b16 %v371, %v370
        %388 = vmatprep.subr.bf16.mxu0 0
        %389 = vmatpush1.bf16.msra.mxu0 %v372
        %390 = vmatprep.subr.bf16.mxu0 0
        %391 = vmatpush1.bf16.msra.mxu0 %v373
        %392 = vmatprep.subr.bf16.mxu0 0
        %393 = vmatpush1.bf16.msra.mxu0 %v374
        %394 = vmatprep.subr.bf16.mxu0 0
        %395 = vmatpush1.bf16.msra.mxu0 %v375
        %396 = vmatprep.subr.bf16.mxu0 0
        %397 = vmatpush1.bf16.msra.mxu0 %v376
        %398 = vmatprep.subr.bf16.mxu0 0
        %399 = vmatpush1.bf16.msra.mxu0 %v377
        %400 = vmatprep.subr.bf16.mxu0 0
        %401 = vmatpush1.bf16.msra.mxu0 %v378
        %402 = vmatprep.subr.bf16.mxu0 0
        %403 = vmatpush1.bf16.msra.mxu0 %v379
        %404 = vmatprep.subr.bf16.mxu0 0
        %405 = vmatpush1.bf16.msra.mxu0 0
        %406 = vmatprep.subr.bf16.mxu0 0
        %407 = vmatpush1.bf16.msra.mxu0 0
        %408 = vmatprep.subr.bf16.mxu0 0
        %409 = vmatpush1.bf16.msra.mxu0 0
        %410 = vmatprep.subr.bf16.mxu0 0
        %411 = vmatpush1.bf16.msra.mxu0 0
        %412 = vmatprep.subr.bf16.mxu0 0
        %413 = vmatpush1.bf16.msra.mxu0 0
        %414 = vmatprep.subr.bf16.mxu0 0
        %415 = vmatpush1.bf16.msra.mxu0 0
        %416 = vmatprep.subr.bf16.mxu0 0
        %417 = vmatpush1.bf16.msra.mxu0 0
        %418 = vmatprep.subr.bf16.mxu0 0
        %419 = vmatpush1.bf16.msra.mxu0 0
        %420 = vmatprep.mubr.bf16.mxu0 0
        %421 = vmatmul.mubr.bf16.gmra.mrb[0].mxu0 %v324
        %v422 = vpop.f32.mrb[0].mxu0
        %v423 = vadd.f32 0.0, %v422
        %v424 = vpop.f32.mrb[0].mxu0
        %v425 = vpop.f32.mrb[0].mxu0
        %v426 = vadd.f32 0.0, %v425
        %v427 = vpop.f32.mrb[0].mxu0
        %428 = vmatprep.mubr.bf16.mxu0 0
        %429 = vmatmul.mubr.bf16.gmra.mrb[0].mxu0 %v325
        %v430 = vpop.f32.mrb[0].mxu0
        %v431 = vadd.f32 0.0, %v430
        %v432 = vpop.f32.mrb[0].mxu0
        %v433 = vpop.f32.mrb[0].mxu0
        %v434 = vadd.f32 0.0, %v433
        %v435 = vpop.f32.mrb[0].mxu0
        %436 = vmatprep.mubr.bf16.mxu0 0
        %437 = vmatmul.mubr.bf16.gmra.mrb[0].mxu0 %v326
        %v438 = vpop.f32.mrb[0].mxu0
        %v439 = vadd.f32 0.0, %v438
        %v440 = vpop.f32.mrb[0].mxu0
        %v441 = vpop.f32.mrb[0].mxu0
        %v442 = vadd.f32 0.0, %v441
        %v443 = vpop.f32.mrb[0].mxu0
        %444 = vmatprep.mubr.bf16.mxu0 0
        %445 = vmatmul.mubr.bf16.gmra.mrb[0].mxu0 %v327
        %v446 = vpop.f32.mrb[0].mxu0
        %v447 = vadd.f32 0.0, %v446
        %v448 = vpop.f32.mrb[0].mxu0
        %v449 = vpop.f32.mrb[0].mxu0
        %v450 = vadd.f32 0.0, %v449
        %v451 = vpop.f32.mrb[0].mxu0
        %452 = vmatprep.mubr.bf16.mxu0 0
        %453 = vmatmul.mubr.bf16.gmra.mrb[0].mxu0 %v328
        %v454 = vpop.f32.mrb[0].mxu0
        %v455 = vadd.f32 0.0, %v454
        %v456 = vpop.f32.mrb[0].mxu0
        %v457 = vpop.f32.mrb[0].mxu0
        %v458 = vadd.f32 0.0, %v457
        %v459 = vpop.f32.mrb[0].mxu0
        %460 = vmatprep.mubr.bf16.mxu0 0
        %461 = vmatmul.mubr.bf16.gmra.mrb[0].mxu0 %v329
        %v462 = vpop.f32.mrb[0].mxu0
        %v463 = vadd.f32 0.0, %v462
        %v464 = vpop.f32.mrb[0].mxu0
        %v465 = vpop.f32.mrb[0].mxu0
        %v466 = vadd.f32 0.0, %v465
        %v467 = vpop.f32.mrb[0].mxu0
        %468 = vmatprep.mubr.bf16.mxu0 0
        %469 = vmatmul.mubr.bf16.gmra.mrb[0].mxu0 %v330
        %v470 = vpop.f32.mrb[0].mxu0
        %v471 = vadd.f32 0.0, %v470
        %v472 = vpop.f32.mrb[0].mxu0
        %v473 = vpop.f32.mrb[0].mxu0
        %v474 = vadd.f32 0.0, %v473
        %v475 = vpop.f32.mrb[0].mxu0
        %476 = vmatprep.mubr.bf16.mxu0 0
        %477 = vmatmul.mubr.bf16.gmra.mrb[0].mxu0 %v331
        %v478 = vpop.f32.mrb[0].mxu0
        %v479 = vadd.f32 0.0, %v478
        %v480 = vpop.f32.mrb[0].mxu0
        %v481 = vpop.f32.mrb[0].mxu0
        %v482 = vadd.f32 0.0, %v481
        %v483 = vpop.f32.mrb[0].mxu0
        %484 = vdwg.mxu0
        %v485 = vpack.c.bf16 %v426, %v423
        %v486 = vpack.c.bf16 %v434, %v431
        %v487 = vpack.c.bf16 %v442, %v439
        %v488 = vpack.c.bf16 %v450, %v447
        %v489 = vpack.c.bf16 %v458, %v455
        %v490 = vpack.c.bf16 %v466, %v463
        %v491 = vpack.c.bf16 %v474, %v471
        %v492 = vpack.c.bf16 %v482, %v479
        %v501 = vunpack.c.l.b16 %v485
        %v502 = vunpack.c.h.b16 %v485
        %v503 = vunpack.c.l.b16 %v486
        %v504 = vunpack.c.h.b16 %v486
        %v505 = vunpack.c.l.b16 %v487
        %v506 = vunpack.c.h.b16 %v487
        %v507 = vunpack.c.l.b16 %v488
        %v508 = vunpack.c.h.b16 %v488
        %v509 = vunpack.c.l.b16 %v489
        %v510 = vunpack.c.h.b16 %v489
        %v511 = vunpack.c.l.b16 %v490
        %v512 = vunpack.c.h.b16 %v490
        %v513 = vunpack.c.l.b16 %v491
        %v514 = vunpack.c.h.b16 %v491
        %v515 = vunpack.c.l.b16 %v492
        %v516 = vunpack.c.h.b16 %v492
        %v517 = vpack.c.b16 %v501, %v501
        %v518 = vpack.c.b16 %v502, %v502
        %v519 = vpack.c.b16 %v503, %v503
        %v520 = vpack.c.b16 %v504, %v504
        %v521 = vpack.c.b16 %v505, %v505
        %v522 = vpack.c.b16 %v506, %v506
        %v523 = vpack.c.b16 %v507, %v507
        %v524 = vpack.c.b16 %v508, %v508
        %v525 = vpack.c.b16 %v509, %v509
        %v526 = vpack.c.b16 %v510, %v510
        %v527 = vpack.c.b16 %v511, %v511
        %v528 = vpack.c.b16 %v512, %v512
        %v529 = vpack.c.b16 %v513, %v513
        %v530 = vpack.c.b16 %v514, %v514
        %v531 = vpack.c.b16 %v515, %v515
        %v532 = vpack.c.b16 %v516, %v516
        %549 = vst [vmem:[%s248] sm:$0xf] %v517
        %550 = vst [vmem:[%s248 + $0x4] sm:$0xf] %v518
        %551 = vst [vmem:[%s248 + $0x8] sm:$0xf] %v519
        %552 = vst [vmem:[%s248 + $0xc] sm:$0xf] %v520
        %553 = vst [vmem:[%s248 + $0x10] sm:$0xf] %v521
        %554 = vst [vmem:[%s248 + $0x14] sm:$0xf] %v522
        %555 = vst [vmem:[%s248 + $0x18] sm:$0xf] %v523
        %556 = vst [vmem:[%s248 + $0x1c] sm:$0xf] %v524
        %557 = vst [vmem:[%s248 + $0x20] sm:$0xf] %v525
        %558 = vst [vmem:[%s248 + $0x24] sm:$0xf] %v526
        %559 = vst [vmem:[%s248 + $0x28] sm:$0xf] %v527
        %560 = vst [vmem:[%s248 + $0x2c] sm:$0xf] %v528
        %561 = vst [vmem:[%s248 + $0x30] sm:$0xf] %v529
        %562 = vst [vmem:[%s248 + $0x34] sm:$0xf] %v530
        %563 = vst [vmem:[%s248 + $0x38] sm:$0xf] %v531
        %564 = vst [vmem:[%s248 + $0x3c] sm:$0xf] %v532
        %v565 = vld [vmem:[#allocation7] sm:$0xf]
        %v566 = vld [vmem:[#allocation7 + $0x4] sm:$0xf]
        %v567 = vld [vmem:[#allocation7 + $0x8] sm:$0xf]
        %v568 = vld [vmem:[#allocation7 + $0xc] sm:$0xf]
        %v569 = vld [vmem:[#allocation7 + $0x10] sm:$0xf]
        %v570 = vld [vmem:[#allocation7 + $0x14] sm:$0xf]
        %v571 = vld [vmem:[#allocation7 + $0x18] sm:$0xf]
        %v572 = vld [vmem:[#allocation7 + $0x1c] sm:$0xf]
        %v573 = vld [vmem:[#allocation7 + $0x20] sm:$0xf]
        %v574 = vld [vmem:[#allocation7 + $0x24] sm:$0xf]
        %v575 = vld [vmem:[#allocation7 + $0x28] sm:$0xf]
        %v576 = vld [vmem:[#allocation7 + $0x2c] sm:$0xf]
        %v577 = vld [vmem:[#allocation7 + $0x30] sm:$0xf]
        %v578 = vld [vmem:[#allocation7 + $0x34] sm:$0xf]
        %v579 = vld [vmem:[#allocation7 + $0x38] sm:$0xf]
        %v580 = vld [vmem:[#allocation7 + $0x3c] sm:$0xf]
        %v597 = vunpack.c.l.b16 %v565
        %v598 = vunpack.c.l.b16 %v566
        %v599 = vunpack.c.l.b16 %v567
        %v600 = vunpack.c.l.b16 %v568
        %v601 = vunpack.c.l.b16 %v569
        %v602 = vunpack.c.l.b16 %v570
        %v603 = vunpack.c.l.b16 %v571
        %v604 = vunpack.c.l.b16 %v572
        %v605 = vunpack.c.l.b16 %v573
        %v606 = vunpack.c.l.b16 %v574
        %v607 = vunpack.c.l.b16 %v575
        %v608 = vunpack.c.l.b16 %v576
        %v609 = vunpack.c.l.b16 %v577
        %v610 = vunpack.c.l.b16 %v578
        %v611 = vunpack.c.l.b16 %v579
        %v612 = vunpack.c.l.b16 %v580
        %v613 = vpack.c.b16 %v598, %v597
        %v614 = vpack.c.b16 %v600, %v599
        %v615 = vpack.c.b16 %v602, %v601
        %v616 = vpack.c.b16 %v604, %v603
        %v617 = vpack.c.b16 %v606, %v605
        %v618 = vpack.c.b16 %v608, %v607
        %v619 = vpack.c.b16 %v610, %v609
        %v620 = vpack.c.b16 %v612, %v611
        %629 = vmatprep.subr.bf16.mxu0 0
        %630 = vmatpush1.bf16.msra.mxu0 %v613
        %631 = vmatprep.subr.bf16.mxu0 0
        %632 = vmatpush1.bf16.msra.mxu0 %v614
        %633 = vmatprep.subr.bf16.mxu0 0
        %634 = vmatpush1.bf16.msra.mxu0 %v615
        %635 = vmatprep.subr.bf16.mxu0 0
        %636 = vmatpush1.bf16.msra.mxu0 %v616
        %637 = vmatprep.subr.bf16.mxu0 0
        %638 = vmatpush1.bf16.msra.mxu0 %v617
        %639 = vmatprep.subr.bf16.mxu0 0
        %640 = vmatpush1.bf16.msra.mxu0 %v618
        %641 = vmatprep.subr.bf16.mxu0 0
        %642 = vmatpush1.bf16.msra.mxu0 %v619
        %643 = vmatprep.subr.bf16.mxu0 0
        %644 = vmatpush1.bf16.msra.mxu0 %v620
        %645 = vmatprep.subr.bf16.mxu0 0
        %646 = vmatpush1.bf16.msra.mxu0 0
        %647 = vmatprep.subr.bf16.mxu0 0
        %648 = vmatpush1.bf16.msra.mxu0 0
        %649 = vmatprep.subr.bf16.mxu0 0
        %650 = vmatpush1.bf16.msra.mxu0 0
        %651 = vmatprep.subr.bf16.mxu0 0
        %652 = vmatpush1.bf16.msra.mxu0 0
        %653 = vmatprep.subr.bf16.mxu0 0
        %654 = vmatpush1.bf16.msra.mxu0 0
        %655 = vmatprep.subr.bf16.mxu0 0
        %656 = vmatpush1.bf16.msra.mxu0 0
        %657 = vmatprep.subr.bf16.mxu0 0
        %658 = vmatpush1.bf16.msra.mxu0 0
        %659 = vmatprep.subr.bf16.mxu0 0
        %660 = vmatpush1.bf16.msra.mxu0 0
        %661 = vmatprep.mubr.bf16.mxu0 0
        %662 = vmatmul.mubr.bf16.gmra.mrb[0].mxu0 %v485
        %v663 = vpop.f32.mrb[0].mxu0
        %v664 = vadd.f32 0.0, %v663
        %v665 = vpop.f32.mrb[0].mxu0
        %v666 = vpop.f32.mrb[0].mxu0
        %v667 = vadd.f32 0.0, %v666
        %v668 = vpop.f32.mrb[0].mxu0
        %669 = vmatprep.mubr.bf16.mxu0 0
        %670 = vmatmul.mubr.bf16.gmra.mrb[0].mxu0 %v486
        %v671 = vpop.f32.mrb[0].mxu0
        %v672 = vadd.f32 0.0, %v671
        %v673 = vpop.f32.mrb[0].mxu0
        %v674 = vpop.f32.mrb[0].mxu0
        %v675 = vadd.f32 0.0, %v674
        %v676 = vpop.f32.mrb[0].mxu0
        %677 = vmatprep.mubr.bf16.mxu0 0
        %678 = vmatmul.mubr.bf16.gmra.mrb[0].mxu0 %v487
        %v679 = vpop.f32.mrb[0].mxu0
        %v680 = vadd.f32 0.0, %v679
        %v681 = vpop.f32.mrb[0].mxu0
        %v682 = vpop.f32.mrb[0].mxu0
        %v683 = vadd.f32 0.0, %v682
        %v684 = vpop.f32.mrb[0].mxu0
        %685 = vmatprep.mubr.bf16.mxu0 0
        %686 = vmatmul.mubr.bf16.gmra.mrb[0].mxu0 %v488
        %v687 = vpop.f32.mrb[0].mxu0
        %v688 = vadd.f32 0.0, %v687
        %v689 = vpop.f32.mrb[0].mxu0
        %v690 = vpop.f32.mrb[0].mxu0
        %v691 = vadd.f32 0.0, %v690
        %v692 = vpop.f32.mrb[0].mxu0
        %693 = vmatprep.mubr.bf16.mxu0 0
        %694 = vmatmul.mubr.bf16.gmra.mrb[0].mxu0 %v489
        %v695 = vpop.f32.mrb[0].mxu0
        %v696 = vadd.f32 0.0, %v695
        %v697 = vpop.f32.mrb[0].mxu0
        %v698 = vpop.f32.mrb[0].mxu0
        %v699 = vadd.f32 0.0, %v698
        %v700 = vpop.f32.mrb[0].mxu0
        %701 = vmatprep.mubr.bf16.mxu0 0
        %702 = vmatmul.mubr.bf16.gmra.mrb[0].mxu0 %v490
        %v703 = vpop.f32.mrb[0].mxu0
        %v704 = vadd.f32 0.0, %v703
        %v705 = vpop.f32.mrb[0].mxu0
        %v706 = vpop.f32.mrb[0].mxu0
        %v707 = vadd.f32 0.0, %v706
        %v708 = vpop.f32.mrb[0].mxu0
        %709 = vmatprep.mubr.bf16.mxu0 0
        %710 = vmatmul.mubr.bf16.gmra.mrb[0].mxu0 %v491
        %v711 = vpop.f32.mrb[0].mxu0
        %v712 = vadd.f32 0.0, %v711
        %v713 = vpop.f32.mrb[0].mxu0
        %v714 = vpop.f32.mrb[0].mxu0
        %v715 = vadd.f32 0.0, %v714
        %v716 = vpop.f32.mrb[0].mxu0
        %717 = vmatprep.mubr.bf16.mxu0 0
        %718 = vmatmul.mubr.bf16.gmra.mrb[0].mxu0 %v492
        %v719 = vpop.f32.mrb[0].mxu0
        %v720 = vadd.f32 0.0, %v719
        %v721 = vpop.f32.mrb[0].mxu0
        %v722 = vpop.f32.mrb[0].mxu0
        %v723 = vadd.f32 0.0, %v722
        %v724 = vpop.f32.mrb[0].mxu0
        %725 = vdwg.mxu0
        %726 = vst [vmem:[%s255] sm:$0xff] %v664
        %727 = vst [vmem:[%s255 + $0x8] sm:$0xff] %v667
        %728 = vst [vmem:[%s255 + $0x10] sm:$0xff] %v672
        %729 = vst [vmem:[%s255 + $0x18] sm:$0xff] %v675
        %730 = vst [vmem:[%s255 + $0x20] sm:$0xff] %v680
        %731 = vst [vmem:[%s255 + $0x28] sm:$0xff] %v683
        %732 = vst [vmem:[%s255 + $0x30] sm:$0xff] %v688
        %733 = vst [vmem:[%s255 + $0x38] sm:$0xff] %v691
        %734 = vst [vmem:[%s255 + $0x40] sm:$0xff] %v696
        %735 = vst [vmem:[%s255 + $0x48] sm:$0xff] %v699
        %736 = vst [vmem:[%s255 + $0x50] sm:$0xff] %v704
        %737 = vst [vmem:[%s255 + $0x58] sm:$0xff] %v707
        %738 = vst [vmem:[%s255 + $0x60] sm:$0xff] %v712
        %739 = vst [vmem:[%s255 + $0x68] sm:$0xff] %v715
        %740 = vst [vmem:[%s255 + $0x70] sm:$0xff] %v720
        %741 = vst [vmem:[%s255 + $0x78] sm:$0xff] %v723
        %s742 = sand.u32 %s102, 1
        %s743 = scalar_lea.sflag [#allocation4], %s742
        %s744 = sand.u32 %s102, 1
        %s745 = smul.addr %s744, 64
        %s746 = scalar_lea.vmem [#allocation8], %s745
        %s747 = sand.u32 %s128, 1
        %s748 = scalar_lea.sflag [#allocation10], %s747
        %s749 = sand.u32 %s128, 1
        %s750 = smul.addr %s749, 128
        %s751 = scalar_lea.vmem [#allocation9], %s750
        // Predicated region
        $region45: #{tpu_custom_call.1} parent=31 // pred_check
          %p752 = pneg %p112
        $region46: #{tpu_custom_call.1} parent=31 // pred_check_branch
          %754 = sbr.rel (%p752) target = $region48
        $region47: #{tpu_custom_call.1} parent=31 // pred_region
          %s755 = smul.u32 16, %s26
          %s757 = ssub.s32 1024, 1024
          %758 = vsyncadd %s743, %s757
          %s759 = smul.addr %s755, 64
          %s760 = scalar_lea.hbm %s3, %s759
          %s761 = sshll.u32 %s746, 4
          %s762 = int_to_ptr.vmem [resolvable:$true] %s761
          %767 = dma.vmem_to_hbm [thread:$0]  %s762, 1024, %s760, %s743, 64, 64, 4
        $region48: #{tpu_custom_call.1} parent=31 // pred_fallthru
          _
        // Predicated region
        $region49: #{tpu_custom_call.1} parent=31 // pred_check
          %p768 = pneg %p138
        $region50: #{tpu_custom_call.1} parent=31 // pred_check_branch
          %770 = sbr.rel (%p768) target = $region52
        $region51: #{tpu_custom_call.1} parent=31 // pred_region
          %s771 = smul.u32 16, %s26
          %s773 = ssub.s32 2048, 2048
          %774 = vsyncadd %s748, %s773
          %s775 = smul.addr %s771, 128
          %s776 = scalar_lea.hbm %s4, %s775
          %s777 = sshll.u32 %s751, 4
          %s778 = int_to_ptr.vmem [resolvable:$true] %s777
          %783 = dma.vmem_to_hbm [thread:$0]  %s778, 2048, %s776, %s748, 128, 128, 8
        $region52: #{tpu_custom_call.1} parent=31 // pred_fallthru
          _
      $region32: #{tpu_custom_call.1} parent=5 // pred_fallthru
        _
      %p784 = scmp.le.s32.totalorder 2, %s21
      // Predicated region
      $region53: #{tpu_custom_call.1} parent=5 // pred_check
        %p785 = pneg %p784
      $region54: #{tpu_custom_call.1} parent=5 // pred_check_branch
        %787 = sbr.rel (%p785) target = $region56
      $region55: #{tpu_custom_call.1} parent=5 // pred_region
        %s788 = ssub.s32 %s21, 2
        // Predicated region
        $region57: #{tpu_custom_call.1} parent=55 // pred_check
          %p789 = pneg %p118
        $region58: #{tpu_custom_call.1} parent=55 // pred_check_branch
          %791 = sbr.rel (%p789) target = $region60
        $region59: #{tpu_custom_call.1} parent=55 // pred_region
          %s792 = sand.u32 %s103, 1
          %s793 = scalar_lea.sflag [#allocation4], %s792
          %s794 = sand.u32 %s103, 1
          %s795 = smul.addr %s794, 64
          %s796 = scalar_lea.vmem [#allocation8], %s795
          %797 = dma.done %s793, 1024
        $region60: #{tpu_custom_call.1} parent=55 // pred_fallthru
          _
        // Predicated region
        $region61: #{tpu_custom_call.1} parent=55 // pred_check
          %p798 = pneg %p144
        $region62: #{tpu_custom_call.1} parent=55 // pred_check_branch
          %800 = sbr.rel (%p798) target = $region64
        $region63: #{tpu_custom_call.1} parent=55 // pred_region
          %s801 = sand.u32 %s129, 1
          %s802 = scalar_lea.sflag [#allocation10], %s801
          %s803 = sand.u32 %s129, 1
          %s804 = smul.addr %s803, 128
          %s805 = scalar_lea.vmem [#allocation9], %s804
          %806 = dma.done %s802, 2048
        $region64: #{tpu_custom_call.1} parent=55 // pred_fallthru
          _
      $region56: #{tpu_custom_call.1} parent=5 // pred_fallthru
        _
    $region6: #{tpu_custom_call.1} parent=1 // loop_footer
      %s25 = sadd.s32 1, %s21
    $region7: #{tpu_custom_call.1} parent=1 // loop_footer_branch
      %20 = sbr.rel target = $region3
    $region8: #{tpu_custom_call.1} parent=1 // loop_exit
      _
    %807 = vsyncpa [#allocation3], 1
    %s808 = scalar_lea.sflag [#allocation3], 1
    %809 = vsyncpa %s808, 1
    %810 = vsyncpa [#allocation6], 1
    %811 = vsyncpa [#allocation4], 1
    %s812 = scalar_lea.sflag [#allocation4], 1
    %813 = vsyncpa %s812, 1
    %814 = vsyncpa [#allocation10], 1
    %s815 = scalar_lea.sflag [#allocation10], 1
    %816 = vsyncpa %s815, 1

</llo_original>
